<compile_context>
chip_gen: v5e
topology: v5e:2x2
jax: 0.10.0
libtpu: 0.0.40
codegen_flags: <defaults>
</compile_context>

<pallas_src>
import jax
import jax.numpy as jnp
from jax import lax
from jax.experimental import pallas as pl
from jax.experimental.pallas import tpu as pltpu


# ----------------------------------------------------------------------------
# Kernel 1: fused 1x1 conv (channel matmul) + bias + nearest-upsampled y add.
#   x_ref  : (TR, W, Cin)      full-resolution row tile of x (NHWC)
#   yw_ref : (TR//2, W, Cout)  y tile, already width-repeated, half row count
#   w_ref  : (Cin, Cout)       resident
#   b_ref  : (1, Cout)         resident
#   o_ref  : (TR*W, Cout)      flat pixel-major output tile
# ----------------------------------------------------------------------------
def _conv1x1_add_kernel(x_ref, yw_ref, w_ref, b_ref, o_ref):
    tr, w, cin = x_ref.shape
    cout = o_ref.shape[-1]

    x2d = x_ref[...].reshape(tr * w, cin)                      # collapse rows
    acc = jnp.dot(x2d, w_ref[...], preferred_element_type=jnp.float32)
    acc = acc + b_ref[...]

    # fused 2x nearest upsample along rows: each half-res row feeds 2 rows.
    yw = yw_ref[...]                                           # (TR//2, W, C)
    y_up = jnp.broadcast_to(yw[:, None, :, :], (tr // 2, 2, w, cout))
    y_up = y_up.reshape(tr, w, cout)                           # leading collapse
    y_up = y_up.reshape(tr * w, cout)

    o_ref[...] = (acc + y_up).astype(o_ref.dtype)


# ----------------------------------------------------------------------------
# Kernel 2: 3x3 conv on a halo row tile, 9 taps unrolled + accumulated in f32.
#   z_ref : (TR+2, W+2, C)  zero-padded halo tile
#   w_ref : (9, C, C)       tap weights (tap = dy*3+dx), resident
#   b_ref : (1, C)          resident
#   o_ref : (TR*W, C)
# ----------------------------------------------------------------------------
def _conv3x3_kernel(z_ref, w_ref, b_ref, o_ref):
    trp2, wp2, c = z_ref.shape
    tr, w = trp2 - 2, wp2 - 2

    z = z_ref[...]
    acc = jnp.broadcast_to(b_ref[...], (tr * w, c)).astype(jnp.float32)
    for tap in range(9):                    # statically unrolled 9-tap reduction
        dy, dx = tap // 3, tap % 3
        patch = z[dy:dy + tr, dx:dx + w, :].reshape(tr * w, c)
        acc = acc + jnp.dot(patch, w_ref[tap],
                            preferred_element_type=jnp.float32)
    o_ref[...] = acc.astype(o_ref.dtype)


# ----------------------------------------------------------------------------
# Tile-size pick: largest even divisor of H whose f32 tile stays ~<= 2 MiB.
# ----------------------------------------------------------------------------
def _pick_tile_rows(H, W, C):
    budget_rows = max(2, (2 * 1024 * 1024) // (4 * W * max(C, 1)))
    tr = 2
    for cand in range(2, H + 1, 2):
        if H % cand == 0 and cand <= budget_rows:
            tr = cand
    return tr


# ----------------------------------------------------------------------------
# Wrapper
# ----------------------------------------------------------------------------
def top_down_layer(x, y, w1, b1, w2, b2, *, tile_rows=None):
    """x: (N, Cin, H, W) NCHW; y: (N, Cout, H//2, W//2) NCHW. Returns NCHW."""
    N, Cin, H, W = x.shape
    Cout = w1.shape[0]
    assert H % 2 == 0 and W % 2 == 0
    assert y.shape == (N, Cout, H // 2, W // 2)
    M = N * H * W

    TR = tile_rows or _pick_tile_rows(H, W, max(Cin, Cout))
    assert H % TR == 0 and TR % 2 == 0
    G = (N * H) // TR                      # row tiles (never straddle images)

    # ---- glue: NCHW -> channel-last row slabs ----
    x3 = jnp.transpose(x, (0, 2, 3, 1)).reshape(N * H, W, Cin)
    # Width-repeat of y here (cheap: half of y_up); height-repeat fused in-kernel.
    y_nhwc = jnp.transpose(y, (0, 2, 3, 1))                    # (N, H/2, W/2, C)
    yw = jnp.repeat(y_nhwc, 2, axis=2).reshape(N * H // 2, W, Cout)

    w1_mat = w1.reshape(Cout, Cin).T                           # (Cin, Cout)
    b1_row = b1.reshape(1, Cout)

    # ---- kernel 1: tiled conv1x1 + bias + upsampled-y add ----
    t2d = pl.pallas_call(
        _conv1x1_add_kernel,
        out_shape=jax.ShapeDtypeStruct((M, Cout), x.dtype),
        grid_spec=pltpu.PrefetchScalarGridSpec(
            num_scalar_prefetch=0,
            grid=(G,),
            in_specs=[
                pl.BlockSpec((TR, W, Cin), lambda i: (i, 0, 0)),
                pl.BlockSpec((TR // 2, W, Cout), lambda i: (i, 0, 0)),
                pl.BlockSpec((Cin, Cout), lambda i: (0, 0)),     # resident
                pl.BlockSpec((1, Cout), lambda i: (0, 0)),       # resident
            ],
            out_specs=pl.BlockSpec((TR * W, Cout), lambda i: (i, 0)),
        ),
        compiler_params=pltpu.CompilerParams(
            dimension_semantics=("parallel",)),
        cost_estimate=pl.CostEstimate(
            flops=2 * M * Cin * Cout,
            transcendentals=0,
            bytes_accessed=4 * (M * Cin + (M // 2) * Cout
                                + Cin * Cout + Cout + M * Cout)),
    )(x3, yw, w1_mat, b1_row)

    # ---- glue: SamePad2d(k=3,s=1) zero pad + pre-slice overlapping halo tiles
    # (each row tile carries its 2 halo rows: ~(TR+2)/TR extra traffic, not 9x).
    t = t2d.reshape(N, H, W, Cout)
    z = jnp.pad(t, ((0, 0), (1, 1), (1, 1), (0, 0)))           # (N, H+2, W+2, C)
    z_tiles = jnp.stack(
        [z[:, k * TR:k * TR + TR + 2] for k in range(H // TR)], axis=1
    ).reshape(G, TR + 2, W + 2, Cout)

    # (Cout, Cin2, 3, 3) -> (3, 3, Cin2, Cout) -> (9, Cin2, Cout); tap = dy*3+dx
    w2_taps = jnp.transpose(w2, (2, 3, 1, 0)).reshape(9, Cout, Cout)
    b2_row = b2.reshape(1, Cout)

    # ---- kernel 2: tiled 3x3 conv (9 taps unrolled in-body) ----
    out2d = pl.pallas_call(
        _conv3x3_kernel,
        out_shape=jax.ShapeDtypeStruct((M, Cout), x.dtype),
        grid_spec=pltpu.PrefetchScalarGridSpec(
            num_scalar_prefetch=0,
            grid=(G,),
            in_specs=[
                pl.BlockSpec((None, TR + 2, W + 2, Cout),
                             lambda i: (i, 0, 0, 0)),
                pl.BlockSpec((9, Cout, Cout), lambda i: (0, 0, 0)),  # resident
                pl.BlockSpec((1, Cout), lambda i: (0, 0)),           # resident
            ],
            out_specs=pl.BlockSpec((TR * W, Cout), lambda i: (i, 0)),
        ),
        compiler_params=pltpu.CompilerParams(
            dimension_semantics=("parallel",)),
        cost_estimate=pl.CostEstimate(
            flops=2 * 9 * M * Cout * Cout,
            transcendentals=0,
            bytes_accessed=4 * (G * (TR + 2) * (W + 2) * Cout
                                + 9 * Cout * Cout + Cout + M * Cout)),
    )(z_tiles, w2_taps, b2_row)

    out = out2d.reshape(N, H, W, Cout)
    return jnp.transpose(out, (0, 3, 1, 2))                    # back to NCHW
    # TODO(synk): optional bf16 matmul-input cast (f32 accumulate) for v6e/v7x
    # is left off to keep exact f32 parity with the PyTorch module.


# ----------------------------------------------------------------------------
# Pure-JAX reference (mirrors the PyTorch forward, NCHW)
# ----------------------------------------------------------------------------
def top_down_layer_ref(x, y, w1, b1, w2, b2):
    y_up = jnp.repeat(jnp.repeat(y, 2, axis=2), 2, axis=3)
    xc = lax.conv_general_dilated(
        x, w1, (1, 1), 'VALID',
        dimension_numbers=('NCHW', 'OIHW', 'NCHW')) + b1[None, :, None, None]
    t = xc + y_up
    tp = jnp.pad(t, ((0, 0), (0, 0), (1, 1), (1, 1)))
    out = lax.conv_general_dilated(
        tp, w2, (1, 1), 'VALID',
        dimension_numbers=('NCHW', 'OIHW', 'NCHW')) + b2[None, :, None, None]
    return out


if __name__ == "__main__":
    N, Cin, Cout, H, W = 2, 4, 8, 16, 16

    key = jax.random.PRNGKey(0)
    kx, ky, kw1, kb1, kw2, kb2 = jax.random.split(key, 6)

    x = jax.random.normal(kx, (N, Cin, H, W), jnp.float32)
    y = jax.random.normal(ky, (N, Cout, H // 2, W // 2), jnp.float32)

    # deterministic parameter init (conv weight shapes follow nn.Conv2d)
    w1 = jax.random.normal(kw1, (Cout, Cin, 1, 1), jnp.float32) * (1.0 / Cin) ** 0.5
    b1 = jax.random.normal(kb1, (Cout,), jnp.float32) * 0.1
    w2 = jax.random.normal(kw2, (Cout, Cout, 3, 3), jnp.float32) * (1.0 / (9 * Cout)) ** 0.5
    b2 = jax.random.normal(kb2, (Cout,), jnp.float32) * 0.1

    out = jax.block_until_ready(top_down_layer(x, y, w1, b1, w2, b2))
    ref = jax.block_until_ready(top_down_layer_ref(x, y, w1, b1, w2, b2))

    assert out.shape == (N, Cout, H, W), out.shape
    assert jnp.allclose(out, ref, rtol=2e-3, atol=2e-3), float(
        jnp.max(jnp.abs(out - ref)))
    print("KERNEL_OK")
</pallas_src>

<mosaic_0001>
module attributes {stable_mosaic.version = 11 : i64} {
  func.func @_conv1x1_add_kernel(%arg0: i32, %arg1: memref<16x16x4xf32, #tpu.memory_space<vmem>>, %arg2: memref<8x16x8xf32, #tpu.memory_space<vmem>>, %arg3: memref<4x8xf32, #tpu.memory_space<vmem>>, %arg4: memref<1x8xf32, #tpu.memory_space<vmem>>, %arg5: memref<256x8xf32, #tpu.memory_space<vmem>>) attributes {dimension_semantics = [#tpu.dimension_semantics<parallel>], iteration_bounds = array<i64: 2>, scalar_prefetch = 0 : i64, scratch_operands = 0 : i64, tpu.core_type = #tpu.core_type<tc>, window_params = [{transform_indices = @transform_0, window_bounds = array<i64: 16, 16, 4>}, {transform_indices = @transform_1, window_bounds = array<i64: 8, 16, 8>}, {pipeline_mode = #tpu.pipeline_mode<synchronous>, transform_indices = @transform_2, window_bounds = array<i64: 4, 8>}, {pipeline_mode = #tpu.pipeline_mode<synchronous>, transform_indices = @transform_3, window_bounds = array<i64: 1, 8>}, {transform_indices = @transform_4, window_bounds = array<i64: 256, 8>}]} {
    %c0 = arith.constant 0 : index
    %c0_0 = arith.constant 0 : index
    %c0_1 = arith.constant 0 : index
    %0 = vector.load %arg1[%c0, %c0_0, %c0_1] : memref<16x16x4xf32, #tpu.memory_space<vmem>>, vector<16x16x4xf32>
    %1 = vector.shape_cast %0 : vector<16x16x4xf32> to vector<256x4xf32>
    %c0_2 = arith.constant 0 : index
    %c0_3 = arith.constant 0 : index
    %2 = vector.load %arg3[%c0_2, %c0_3] : memref<4x8xf32, #tpu.memory_space<vmem>>, vector<4x8xf32>
    %cst = arith.constant dense<0.000000e+00> : vector<256x8xf32>
    %3 = tpu.matmul %1, %2, %cst {dimension_numbers = #tpu.dot_dimension_numbers<[1], [0], [0], [1], [0, 0, 1, 1], [], []>} : vector<256x4xf32>, vector<4x8xf32>, vector<256x8xf32> -> vector<256x8xf32>
    %c0_4 = arith.constant 0 : index
    %c0_5 = arith.constant 0 : index
    %4 = vector.load %arg4[%c0_4, %c0_5] : memref<1x8xf32, #tpu.memory_space<vmem>>, vector<1x8xf32>
    %5 = vector.broadcast %4 : vector<1x8xf32> to vector<256x8xf32>
    %6 = arith.addf %3, %5 : vector<256x8xf32>
    %c0_6 = arith.constant 0 : index
    %c0_7 = arith.constant 0 : index
    %c0_8 = arith.constant 0 : index
    %7 = vector.load %arg2[%c0_6, %c0_7, %c0_8] : memref<8x16x8xf32, #tpu.memory_space<vmem>>, vector<8x16x8xf32>
    %8 = vector.shape_cast %7 : vector<8x16x8xf32> to vector<8x1x16x8xf32>
    %9 = vector.shape_cast %8 : vector<8x1x16x8xf32> to vector<8x1x16x8xf32>
    %10 = vector.broadcast %9 : vector<8x1x16x8xf32> to vector<8x2x16x8xf32>
    %11 = vector.shape_cast %10 : vector<8x2x16x8xf32> to vector<16x16x8xf32>
    %12 = vector.shape_cast %11 : vector<16x16x8xf32> to vector<256x8xf32>
    %13 = arith.addf %6, %12 : vector<256x8xf32>
    %c0_9 = arith.constant 0 : index
    %c0_10 = arith.constant 0 : index
    %14 = vector.load %arg5[%c0_9, %c0_10] : memref<256x8xf32, #tpu.memory_space<vmem>>, vector<256x8xf32>
    tpu.vector_store %arg5[%c0_9, %c0_10], %13 {strides = array<i32>} : memref<256x8xf32, #tpu.memory_space<vmem>>, vector<256x8xf32>,
    return
  }
  func.func @transform_0(%arg0: i32) -> (i32, i32, i32) {
    %c0_i32 = arith.constant 0 : i32
    %c0_i32_0 = arith.constant 0 : i32
    %c0_i32_1 = arith.constant 0 : i32
    return %arg0, %c0_i32, %c0_i32_0 : i32, i32, i32
  }
  func.func @transform_1(%arg0: i32) -> (i32, i32, i32) {
    %c0_i32 = arith.constant 0 : i32
    %c0_i32_0 = arith.constant 0 : i32
    %c0_i32_1 = arith.constant 0 : i32
    return %arg0, %c0_i32, %c0_i32_0 : i32, i32, i32
  }
  func.func @transform_2(%arg0: i32) -> (i32, i32) {
    %c0_i32 = arith.constant 0 : i32
    %c0_i32_0 = arith.constant 0 : i32
    %c0_i32_1 = arith.constant 0 : i32
    return %c0_i32, %c0_i32_0 : i32, i32
  }
  func.func @transform_3(%arg0: i32) -> (i32, i32) {
    %c0_i32 = arith.constant 0 : i32
    %c0_i32_0 = arith.constant 0 : i32
    %c0_i32_1 = arith.constant 0 : i32
    return %c0_i32, %c0_i32_0 : i32, i32
  }
  func.func @transform_4(%arg0: i32) -> (i32, i32) {
    %c0_i32 = arith.constant 0 : i32
    %c0_i32_0 = arith.constant 0 : i32
    return %arg0, %c0_i32 : i32, i32
  }
}

</mosaic_0001>

<llo_original>
// kernel: tpu_custom_call.1
$region0: #{tpu_custom_call.1}
  #allocation0 [shape = 'u32[]', space=smem, size = 0x4, offset = 0x4, fixed_abs, tag = 'smem constant byte address 0x4 - core index']
  #allocation1 [shape = 'u32[72,128]{1,0:T(1,128)}', space=vmem, size = 0x9000, scoped, tag = 'internal scratch']
  %s0 = inlined_call_operand.vmem [shape: f32[32,16,4], index: 0, kind: input, shape index: {}]
  %s1 = inlined_call_operand.vmem [shape: f32[16,16,8], index: 1, kind: input, shape index: {}]
  %s2 = inlined_call_operand.vmem [shape: f32[4,8], index: 2, kind: input, shape index: {}]
  %s3 = inlined_call_operand.vmem [shape: f32[1,8], index: 3, kind: input, shape index: {}]
  %s4 = inlined_call_operand.vmem [shape: f32[512,8], index: 4, kind: output, shape index: {}]
  %s5 = sld [smem:[#allocation0]]
  $region49: #{tpu_custom_call.1} parent=0
    _
  %s7 = ssub.s32 1, %s5
  %s8 = scalar_select 0, %s7, %s5
  loop: start=0, step=1, limit=4
  $region2: #{tpu_custom_call.1} parent=0 // loop_pre_header
    _
  $region3: #{tpu_custom_call.1} parent=0 // loop_header
    %s10 = sphi 0, %s14
    %p11 = scmp.ge.s32.totalorder %s10, 4
    %s20 = sphi 0, %s22
    %s23 = sphi 0, %s20
    %s24 = sphi 0, %s23
    %s40 = sphi 0, %s24
    %s46 = sphi 0, %s48
    %s49 = sphi 0, %s46
    %s50 = sphi 0, %s49
    %s66 = sphi 0, %s50
    %s70 = sphi 0, %s70
    %s72 = sphi 0, %s70
    %s73 = sphi 0, %s72
    %s87 = sphi 0, %s73
    %s91 = sphi 0, %s91
    %s93 = sphi 0, %s91
    %s94 = sphi 0, %s93
    %s108 = sphi 0, %s94
    %s114 = sphi 0, %s116
    %s117 = sphi 0, %s114
    %s118 = sphi 0, %s117
    %s134 = sphi 0, %s118
  $region4: #{tpu_custom_call.1} parent=0 // loop_header_branch
    %13 = sbr.rel (%p11) target = $region8
  $region5: #{tpu_custom_call.1} parent=0 // loop_body
    %s15 = ssub.s32 %s10, 1
    %s16 = ssub.s32 %s10, 2
    %s17 = sadd.s32 %s10, 1
    %s18 = ssub.s32 %s10, %s17
    %p19 = scmp.eq.s32.totalorder %s18, 0
    %s21 = sadd.s32 %s20, 1
    %s22 = scalar_select %p19, %s20, %s21
    %p25 = pneg %p19
    %p26 = scmp.eq.s32.totalorder %s10, 1
    %p27 = por %p25, %p26
    %p28 = scmp.ne.s32.totalorder %s20, %s23
    %p29 = scmp.eq.s32.totalorder %s10, 0
    %p30 = por %p28, %p29
    %p31 = scmp.ne.s32.totalorder %s20, %s23
    %p32 = scmp.eq.s32.totalorder %s15, 1
    %p33 = por %p31, %p32
    %p34 = scmp.ne.s32.totalorder %s23, %s24
    %p35 = scmp.eq.s32.totalorder %s15, 0
    %p36 = por %p34, %p35
    %p37 = scmp.ne.s32.totalorder %s23, %s24
    %p38 = scmp.eq.s32.totalorder %s16, 1
    %p39 = por %p37, %p38
    %p41 = scmp.ne.s32.totalorder %s24, %s40
    %p42 = scmp.eq.s32.totalorder %s16, 0
    %p43 = por %p41, %p42
    %s44 = ssub.s32 %s10, %s17
    %p45 = scmp.eq.s32.totalorder %s44, 0
    %s47 = sadd.s32 %s46, 1
    %s48 = scalar_select %p45, %s46, %s47
    %p51 = pneg %p45
    %p52 = scmp.eq.s32.totalorder %s10, 1
    %p53 = por %p51, %p52
    %p54 = scmp.ne.s32.totalorder %s46, %s49
    %p55 = scmp.eq.s32.totalorder %s10, 0
    %p56 = por %p54, %p55
    %p57 = scmp.ne.s32.totalorder %s46, %s49
    %p58 = scmp.eq.s32.totalorder %s15, 1
    %p59 = por %p57, %p58
    %p60 = scmp.ne.s32.totalorder %s49, %s50
    %p61 = scmp.eq.s32.totalorder %s15, 0
    %p62 = por %p60, %p61
    %p63 = scmp.ne.s32.totalorder %s49, %s50
    %p64 = scmp.eq.s32.totalorder %s16, 1
    %p65 = por %p63, %p64
    %p67 = scmp.ne.s32.totalorder %s50, %s66
    %p68 = scmp.eq.s32.totalorder %s16, 0
    %p69 = por %p67, %p68
    %s71 = sadd.s32 %s70, 1
    %p74 = scmp.eq.s32.totalorder %s10, 1
    %p75 = scmp.ne.s32.totalorder %s70, %s72
    %p76 = scmp.eq.s32.totalorder %s10, 0
    %p77 = por %p75, %p76
    %p78 = scmp.ne.s32.totalorder %s70, %s72
    %p79 = scmp.eq.s32.totalorder %s15, 1
    %p80 = por %p78, %p79
    %p81 = scmp.ne.s32.totalorder %s72, %s73
    %p82 = scmp.eq.s32.totalorder %s15, 0
    %p83 = por %p81, %p82
    %p84 = scmp.ne.s32.totalorder %s72, %s73
    %p85 = scmp.eq.s32.totalorder %s16, 1
    %p86 = por %p84, %p85
    %p88 = scmp.ne.s32.totalorder %s73, %s87
    %p89 = scmp.eq.s32.totalorder %s16, 0
    %p90 = por %p88, %p89
    %s92 = sadd.s32 %s91, 1
    %p95 = scmp.eq.s32.totalorder %s10, 1
    %p96 = scmp.ne.s32.totalorder %s91, %s93
    %p97 = scmp.eq.s32.totalorder %s10, 0
    %p98 = por %p96, %p97
    %p99 = scmp.ne.s32.totalorder %s91, %s93
    %p100 = scmp.eq.s32.totalorder %s15, 1
    %p101 = por %p99, %p100
    %p102 = scmp.ne.s32.totalorder %s93, %s94
    %p103 = scmp.eq.s32.totalorder %s15, 0
    %p104 = por %p102, %p103
    %p105 = scmp.ne.s32.totalorder %s93, %s94
    %p106 = scmp.eq.s32.totalorder %s16, 1
    %p107 = por %p105, %p106
    %p109 = scmp.ne.s32.totalorder %s94, %s108
    %p110 = scmp.eq.s32.totalorder %s16, 0
    %p111 = por %p109, %p110
    %s112 = ssub.s32 %s10, %s17
    %p113 = scmp.eq.s32.totalorder %s112, 0
    %s115 = sadd.s32 %s114, 1
    %s116 = scalar_select %p113, %s114, %s115
    %p119 = pneg %p113
    %p120 = scmp.eq.s32.totalorder %s10, 1
    %p121 = por %p119, %p120
    %p122 = scmp.ne.s32.totalorder %s114, %s117
    %p123 = scmp.eq.s32.totalorder %s10, 0
    %p124 = por %p122, %p123
    %p125 = scmp.ne.s32.totalorder %s114, %s117
    %p126 = scmp.eq.s32.totalorder %s15, 1
    %p127 = por %p125, %p126
    %p128 = scmp.ne.s32.totalorder %s117, %s118
    %p129 = scmp.eq.s32.totalorder %s15, 0
    %p130 = por %p128, %p129
    %p131 = scmp.ne.s32.totalorder %s117, %s118
    %p132 = scmp.eq.s32.totalorder %s16, 1
    %p133 = por %p131, %p132
    %p135 = scmp.ne.s32.totalorder %s118, %s134
    %p136 = scmp.eq.s32.totalorder %s16, 0
    %p137 = por %p135, %p136
    %p138 = scmp.le.s32.totalorder 1, %s10
    %p139 = scmp.lt.s32.totalorder %s10, 3
    %p140 = pnand %p138, %p139
    %p141 = pneg %p140
    // Predicated region
    $region9: #{tpu_custom_call.1} parent=5 // pred_check
      _
    $region10: #{tpu_custom_call.1} parent=5 // pred_check_branch
      %143 = sbr.rel (%p140) target = $region12
    $region11: #{tpu_custom_call.1} parent=5 // pred_region
      %s144 = ssub.s32 %s10, 1
      // Predicated region
      $region13: #{tpu_custom_call.1} parent=11 // pred_check
        %p145 = pneg %p83
      $region14: #{tpu_custom_call.1} parent=11 // pred_check_branch
        %147 = sbr.rel (%p145) target = $region16
      $region15: #{tpu_custom_call.1} parent=11 // pred_region
        _
      $region16: #{tpu_custom_call.1} parent=11 // pred_fallthru
        _
      // Predicated region
      $region17: #{tpu_custom_call.1} parent=11 // pred_check
        %p148 = pneg %p104
      $region18: #{tpu_custom_call.1} parent=11 // pred_check_branch
        %150 = sbr.rel (%p148) target = $region20
      $region19: #{tpu_custom_call.1} parent=11 // pred_region
        _
      $region20: #{tpu_custom_call.1} parent=11 // pred_fallthru
        _
    $region12: #{tpu_custom_call.1} parent=5 // pred_fallthru
      _
    %p151 = scmp.lt.s32.totalorder %s10, 2
    // Predicated region
    $region21: #{tpu_custom_call.1} parent=5 // pred_check
      %p152 = pneg %p151
    $region22: #{tpu_custom_call.1} parent=5 // pred_check_branch
      %154 = sbr.rel (%p152) target = $region24
    $region23: #{tpu_custom_call.1} parent=5 // pred_region
      // Predicated region
      $region25: #{tpu_custom_call.1} parent=23 // pred_check
        %p155 = pneg %p30
      $region26: #{tpu_custom_call.1} parent=23 // pred_check_branch
        %157 = sbr.rel (%p155) target = $region28
      $region27: #{tpu_custom_call.1} parent=23 // pred_region
        %s158 = smul.u32 16, %s10
        %p159 = scmp.lt.s32.totalorder %s158, 31
        %s160 = scalar_select %p159, %s158, 31
        %s161 = smul.addr %s160, 2
        %s162 = smul.addr %s161, 8
        %s163 = scalar_lea.vmem %s0, %s162
        %s164 = smul.u32 16, %s10
      $region28: #{tpu_custom_call.1} parent=23 // pred_fallthru
        _
      // Predicated region
      $region29: #{tpu_custom_call.1} parent=23 // pred_check
        %p165 = pneg %p56
      $region30: #{tpu_custom_call.1} parent=23 // pred_check_branch
        %167 = sbr.rel (%p165) target = $region32
      $region31: #{tpu_custom_call.1} parent=23 // pred_region
        %s168 = smul.u32 8, %s10
        %p169 = scmp.lt.s32.totalorder %s168, 15
        %s170 = scalar_select %p169, %s168, 15
        %s171 = smul.addr %s170, 2
        %s172 = smul.addr %s171, 8
        %s173 = scalar_lea.vmem %s1, %s172
        %s174 = smul.u32 8, %s10
      $region32: #{tpu_custom_call.1} parent=23 // pred_fallthru
        _
    $region24: #{tpu_custom_call.1} parent=5 // pred_fallthru
      _
    %p175 = scmp.le.s32.totalorder 1, %s10
    %p176 = scmp.lt.s32.totalorder %s10, 3
    %p177 = pnand %p175, %p176
    %p178 = pneg %p177
    // Predicated region
    $region33: #{tpu_custom_call.1} parent=5 // pred_check
      _
    $region34: #{tpu_custom_call.1} parent=5 // pred_check_branch
      %180 = sbr.rel (%p177) target = $region36
    $region35: #{tpu_custom_call.1} parent=5 // pred_region
      %s181 = ssub.s32 %s10, 1
      %s182 = smul.u32 16, %s15
      %p183 = scmp.lt.s32.totalorder %s182, 31
      %s184 = scalar_select %p183, %s182, 31
      %s185 = smul.addr %s184, 2
      %s186 = smul.addr %s185, 8
      %s187 = scalar_lea.vmem %s0, %s186
      %p188 = pneg %p36
      %p189 = pneg %p33
      %s190 = smul.u32 8, %s15
      %p191 = scmp.lt.s32.totalorder %s190, 15
      %s192 = scalar_select %p191, %s190, 15
      %s193 = smul.addr %s192, 2
      %s194 = smul.addr %s193, 8
      %s195 = scalar_lea.vmem %s1, %s194
      %p196 = pneg %p62
      %p197 = pneg %p59
      %p198 = pneg %p83
      %p199 = pneg %p80
      %p200 = pneg %p104
      %p201 = pneg %p101
      %p202 = pneg %p130
      %p203 = pneg %p127
      %s204 = smul.u32 32, %s15
      %p205 = scmp.lt.s32.totalorder %s204, 63
      %s206 = scalar_select %p205, %s204, 63
      %s207 = smul.addr %s206, 8
      %s208 = scalar_lea.vmem %s4, %s207
      %s209 = smul.u32 16, %s15
      %p210 = scmp.lt.s32.totalorder %s209, 31
      %s211 = scalar_select %p210, %s209, 31
      %s212 = smul.addr %s211, 2
      %s213 = smul.addr %s212, 8
      %s214 = scalar_lea.vmem %s0, %s213
      %s215 = smul.u32 16, %s15
      %s216 = smul.u32 8, %s15
      %p217 = scmp.lt.s32.totalorder %s216, 15
      %s218 = scalar_select %p217, %s216, 15
      %s219 = smul.addr %s218, 2
      %s220 = smul.addr %s219, 8
      %s221 = scalar_lea.vmem %s1, %s220
      %s222 = smul.u32 8, %s15
      %s223 = smul.u32 32, %s15
      %p224 = scmp.lt.s32.totalorder %s223, 63
      %s225 = scalar_select %p224, %s223, 63
      %s226 = smul.addr %s225, 8
      %s227 = scalar_lea.vmem %s4, %s226
      %s228 = smul.u32 32, %s15
      %v229 = vld [vmem:[%s214] sm:$0xff]
      %v230 = vld [vmem:[%s214 + $0x8] sm:$0xff]
      %v231 = vld [vmem:[%s214 + $0x10] sm:$0xff]
      %v232 = vld [vmem:[%s214 + $0x18] sm:$0xff]
      %v233 = vld [vmem:[%s214 + $0x20] sm:$0xff]
      %v234 = vld [vmem:[%s214 + $0x28] sm:$0xff]
      %v235 = vld [vmem:[%s214 + $0x30] sm:$0xff]
      %v236 = vld [vmem:[%s214 + $0x38] sm:$0xff]
      %v237 = vld [vmem:[%s214 + $0x40] sm:$0xff]
      %v238 = vld [vmem:[%s214 + $0x48] sm:$0xff]
      %v239 = vld [vmem:[%s214 + $0x50] sm:$0xff]
      %v240 = vld [vmem:[%s214 + $0x58] sm:$0xff]
      %v241 = vld [vmem:[%s214 + $0x60] sm:$0xff]
      %v242 = vld [vmem:[%s214 + $0x68] sm:$0xff]
      %v243 = vld [vmem:[%s214 + $0x70] sm:$0xff]
      %v244 = vld [vmem:[%s214 + $0x78] sm:$0xff]
      %v245 = vld [vmem:[%s214 + $0x80] sm:$0xff]
      %v246 = vld [vmem:[%s214 + $0x88] sm:$0xff]
      %v247 = vld [vmem:[%s214 + $0x90] sm:$0xff]
      %v248 = vld [vmem:[%s214 + $0x98] sm:$0xff]
      %v249 = vld [vmem:[%s214 + $0xa0] sm:$0xff]
      %v250 = vld [vmem:[%s214 + $0xa8] sm:$0xff]
      %v251 = vld [vmem:[%s214 + $0xb0] sm:$0xff]
      %v252 = vld [vmem:[%s214 + $0xb8] sm:$0xff]
      %v253 = vld [vmem:[%s214 + $0xc0] sm:$0xff]
      %v254 = vld [vmem:[%s214 + $0xc8] sm:$0xff]
      %v255 = vld [vmem:[%s214 + $0xd0] sm:$0xff]
      %v256 = vld [vmem:[%s214 + $0xd8] sm:$0xff]
      %v257 = vld [vmem:[%s214 + $0xe0] sm:$0xff]
      %v258 = vld [vmem:[%s214 + $0xe8] sm:$0xff]
      %v259 = vld [vmem:[%s214 + $0xf0] sm:$0xff]
      %v260 = vld [vmem:[%s214 + $0xf8] sm:$0xff]
      %v261 = vld [vmem:[%s2] sm:$0xf]
      %v262 = vld [vmem:[%s3] sm:$0x1]
      %v264 = vperm.slane %v262, 0
      %vm266 = vcmask 31744
      %v268 = vsel %vm266, %v229, 0
      %v271 = vsel %vm266, %v230, 0
      %v274 = vsel %vm266, %v231, 0
      %v277 = vsel %vm266, %v232, 0
      %v280 = vsel %vm266, %v233, 0
      %v283 = vsel %vm266, %v234, 0
      %v286 = vsel %vm266, %v235, 0
      %v289 = vsel %vm266, %v236, 0
      %v292 = vsel %vm266, %v237, 0
      %v295 = vsel %vm266, %v238, 0
      %v298 = vsel %vm266, %v239, 0
      %v301 = vsel %vm266, %v240, 0
      %v304 = vsel %vm266, %v241, 0
      %v307 = vsel %vm266, %v242, 0
      %v310 = vsel %vm266, %v243, 0
      %v313 = vsel %vm266, %v244, 0
      %v316 = vsel %vm266, %v245, 0
      %v319 = vsel %vm266, %v246, 0
      %v322 = vsel %vm266, %v247, 0
      %v325 = vsel %vm266, %v248, 0
      %v328 = vsel %vm266, %v249, 0
      %v331 = vsel %vm266, %v250, 0
      %v334 = vsel %vm266, %v251, 0
      %v337 = vsel %vm266, %v252, 0
      %v340 = vsel %vm266, %v253, 0
      %v343 = vsel %vm266, %v254, 0
      %v346 = vsel %vm266, %v255, 0
      %v349 = vsel %vm266, %v256, 0
      %v352 = vsel %vm266, %v257, 0
      %v355 = vsel %vm266, %v258, 0
      %v358 = vsel %vm266, %v259, 0
      %v361 = vsel %vm266, %v260, 0
      %vm363 = vcmask 1043456
      %v365 = vsel %vm363, %v261, 0
      %367 = vmatpush.msra.mxu0 0.0
      %368 = vmatpush.msra.mxu0 0.0
      %369 = vmatpush.msra.mxu0 0.0
      %370 = vmatpush.msra.mxu0 0.0
      %371 = vmatpush.msra.mxu0 0.0
      %372 = vmatpush.msra.mxu0 0.0
      %373 = vmatpush.msra.mxu0 0.0
      %374 = vmatpush.msra.mxu0 0.0
      %375 = vmatpush.msra.mxu0 0.0
      %376 = vmatpush.msra.mxu0 0.0
      %377 = vmatpush.msra.mxu0 0.0
      %378 = vmatpush.msra.mxu0 0.0
      %379 = vmatpush.msra.mxu0 0.0
      %380 = vmatpush.msra.mxu0 0.0
      %381 = vmatpush.msra.mxu0 0.0
      %382 = vmatpush.msra.mxu0 %v365
      %383 = vmatmul.f32.gmra.mxu0 %v268
      %v384 = vpop.f32.mrf.mxu0
      %v385 = vadd.f32 %v264, %v384
      %386 = vmatmul.f32.gmra.mxu0 %v271
      %v387 = vpop.f32.mrf.mxu0
      %v388 = vadd.f32 %v264, %v387
      %389 = vmatmul.f32.gmra.mxu0 %v274
      %v390 = vpop.f32.mrf.mxu0
      %v391 = vadd.f32 %v264, %v390
      %392 = vmatmul.f32.gmra.mxu0 %v277
      %v393 = vpop.f32.mrf.mxu0
      %v394 = vadd.f32 %v264, %v393
      %395 = vmatmul.f32.gmra.mxu0 %v280
      %v396 = vpop.f32.mrf.mxu0
      %v397 = vadd.f32 %v264, %v396
      %398 = vmatmul.f32.gmra.mxu0 %v283
      %v399 = vpop.f32.mrf.mxu0
      %v400 = vadd.f32 %v264, %v399
      %401 = vmatmul.f32.gmra.mxu0 %v286
      %v402 = vpop.f32.mrf.mxu0
      %v403 = vadd.f32 %v264, %v402
      %404 = vmatmul.f32.gmra.mxu0 %v289
      %v405 = vpop.f32.mrf.mxu0
      %v406 = vadd.f32 %v264, %v405
      %407 = vmatmul.f32.gmra.mxu0 %v292
      %v408 = vpop.f32.mrf.mxu0
      %v409 = vadd.f32 %v264, %v408
      %410 = vmatmul.f32.gmra.mxu0 %v295
      %v411 = vpop.f32.mrf.mxu0
      %v412 = vadd.f32 %v264, %v411
      %413 = vmatmul.f32.gmra.mxu0 %v298
      %v414 = vpop.f32.mrf.mxu0
      %v415 = vadd.f32 %v264, %v414
      %416 = vmatmul.f32.gmra.mxu0 %v301
      %v417 = vpop.f32.mrf.mxu0
      %v418 = vadd.f32 %v264, %v417
      %419 = vmatmul.f32.gmra.mxu0 %v304
      %v420 = vpop.f32.mrf.mxu0
      %v421 = vadd.f32 %v264, %v420
      %422 = vmatmul.f32.gmra.mxu0 %v307
      %v423 = vpop.f32.mrf.mxu0
      %v424 = vadd.f32 %v264, %v423
      %425 = vmatmul.f32.gmra.mxu0 %v310
      %v426 = vpop.f32.mrf.mxu0
      %v427 = vadd.f32 %v264, %v426
      %428 = vmatmul.f32.gmra.mxu0 %v313
      %v429 = vpop.f32.mrf.mxu0
      %v430 = vadd.f32 %v264, %v429
      %431 = vmatmul.f32.gmra.mxu0 %v316
      %v432 = vpop.f32.mrf.mxu0
      %v433 = vadd.f32 %v264, %v432
      %434 = vmatmul.f32.gmra.mxu0 %v319
      %v435 = vpop.f32.mrf.mxu0
      %v436 = vadd.f32 %v264, %v435
      %437 = vmatmul.f32.gmra.mxu0 %v322
      %v438 = vpop.f32.mrf.mxu0
      %v439 = vadd.f32 %v264, %v438
      %440 = vmatmul.f32.gmra.mxu0 %v325
      %v441 = vpop.f32.mrf.mxu0
      %v442 = vadd.f32 %v264, %v441
      %443 = vmatmul.f32.gmra.mxu0 %v328
      %v444 = vpop.f32.mrf.mxu0
      %v445 = vadd.f32 %v264, %v444
      %446 = vmatmul.f32.gmra.mxu0 %v331
      %v447 = vpop.f32.mrf.mxu0
      %v448 = vadd.f32 %v264, %v447
      %449 = vmatmul.f32.gmra.mxu0 %v334
      %v450 = vpop.f32.mrf.mxu0
      %v451 = vadd.f32 %v264, %v450
      %452 = vmatmul.f32.gmra.mxu0 %v337
      %v453 = vpop.f32.mrf.mxu0
      %v454 = vadd.f32 %v264, %v453
      %455 = vmatmul.f32.gmra.mxu0 %v340
      %v456 = vpop.f32.mrf.mxu0
      %v457 = vadd.f32 %v264, %v456
      %458 = vmatmul.f32.gmra.mxu0 %v343
      %v459 = vpop.f32.mrf.mxu0
      %v460 = vadd.f32 %v264, %v459
      %461 = vmatmul.f32.gmra.mxu0 %v346
      %v462 = vpop.f32.mrf.mxu0
      %v463 = vadd.f32 %v264, %v462
      %464 = vmatmul.f32.gmra.mxu0 %v349
      %v465 = vpop.f32.mrf.mxu0
      %v466 = vadd.f32 %v264, %v465
      %467 = vmatmul.f32.gmra.mxu0 %v352
      %v468 = vpop.f32.mrf.mxu0
      %v469 = vadd.f32 %v264, %v468
      %470 = vmatmul.f32.gmra.mxu0 %v355
      %v471 = vpop.f32.mrf.mxu0
      %v472 = vadd.f32 %v264, %v471
      %473 = vmatmul.f32.gmra.mxu0 %v358
      %v474 = vpop.f32.mrf.mxu0
      %v475 = vadd.f32 %v264, %v474
      %476 = vmatmul.f32.gmra.mxu0 %v361
      %v477 = vpop.f32.mrf.mxu0
      %v478 = vadd.f32 %v264, %v477
      %479 = vdwg.mxu0
      %v480 = vld [vmem:[%s221] sm:$0xff]
      %v481 = vld [vmem:[%s221 + $0x8] sm:$0xff]
      %v482 = vld [vmem:[%s221 + $0x10] sm:$0xff]
      %v483 = vld [vmem:[%s221 + $0x18] sm:$0xff]
      %v484 = vld [vmem:[%s221 + $0x20] sm:$0xff]
      %v485 = vld [vmem:[%s221 + $0x28] sm:$0xff]
      %v486 = vld [vmem:[%s221 + $0x30] sm:$0xff]
      %v487 = vld [vmem:[%s221 + $0x38] sm:$0xff]
      %v488 = vld [vmem:[%s221 + $0x40] sm:$0xff]
      %v489 = vld [vmem:[%s221 + $0x48] sm:$0xff]
      %v490 = vld [vmem:[%s221 + $0x50] sm:$0xff]
      %v491 = vld [vmem:[%s221 + $0x58] sm:$0xff]
      %v492 = vld [vmem:[%s221 + $0x60] sm:$0xff]
      %v493 = vld [vmem:[%s221 + $0x68] sm:$0xff]
      %v494 = vld [vmem:[%s221 + $0x70] sm:$0xff]
      %v495 = vld [vmem:[%s221 + $0x78] sm:$0xff]
      %v496 = vadd.f32 %v385, %v480
      %v497 = vadd.f32 %v388, %v481
      %v498 = vadd.f32 %v391, %v480
      %v499 = vadd.f32 %v394, %v481
      %v500 = vadd.f32 %v397, %v482
      %v501 = vadd.f32 %v400, %v483
      %v502 = vadd.f32 %v403, %v482
      %v503 = vadd.f32 %v406, %v483
      %v504 = vadd.f32 %v409, %v484
      %v505 = vadd.f32 %v412, %v485
      %v506 = vadd.f32 %v415, %v484
      %v507 = vadd.f32 %v418, %v485
      %v508 = vadd.f32 %v421, %v486
      %v509 = vadd.f32 %v424, %v487
      %v510 = vadd.f32 %v427, %v486
      %v511 = vadd.f32 %v430, %v487
      %v512 = vadd.f32 %v433, %v488
      %v513 = vadd.f32 %v436, %v489
      %v514 = vadd.f32 %v439, %v488
      %v515 = vadd.f32 %v442, %v489
      %v516 = vadd.f32 %v445, %v490
      %v517 = vadd.f32 %v448, %v491
      %v518 = vadd.f32 %v451, %v490
      %v519 = vadd.f32 %v454, %v491
      %v520 = vadd.f32 %v457, %v492
      %v521 = vadd.f32 %v460, %v493
      %v522 = vadd.f32 %v463, %v492
      %v523 = vadd.f32 %v466, %v493
      %v524 = vadd.f32 %v469, %v494
      %v525 = vadd.f32 %v472, %v495
      %v526 = vadd.f32 %v475, %v494
      %v527 = vadd.f32 %v478, %v495
      %vm528 = vcmask 64512
      %529 = vst.msk [vmem:[%s227] sm:$0xff] %vm528, %v496
      %530 = vst.msk [vmem:[%s227 + $0x8] sm:$0xff] %vm528, %v497
      %531 = vst.msk [vmem:[%s227 + $0x10] sm:$0xff] %vm528, %v498
      %532 = vst.msk [vmem:[%s227 + $0x18] sm:$0xff] %vm528, %v499
      %533 = vst.msk [vmem:[%s227 + $0x20] sm:$0xff] %vm528, %v500
      %534 = vst.msk [vmem:[%s227 + $0x28] sm:$0xff] %vm528, %v501
      %535 = vst.msk [vmem:[%s227 + $0x30] sm:$0xff] %vm528, %v502
      %536 = vst.msk [vmem:[%s227 + $0x38] sm:$0xff] %vm528, %v503
      %537 = vst.msk [vmem:[%s227 + $0x40] sm:$0xff] %vm528, %v504
      %538 = vst.msk [vmem:[%s227 + $0x48] sm:$0xff] %vm528, %v505
      %539 = vst.msk [vmem:[%s227 + $0x50] sm:$0xff] %vm528, %v506
      %540 = vst.msk [vmem:[%s227 + $0x58] sm:$0xff] %vm528, %v507
      %541 = vst.msk [vmem:[%s227 + $0x60] sm:$0xff] %vm528, %v508
      %542 = vst.msk [vmem:[%s227 + $0x68] sm:$0xff] %vm528, %v509
      %543 = vst.msk [vmem:[%s227 + $0x70] sm:$0xff] %vm528, %v510
      %544 = vst.msk [vmem:[%s227 + $0x78] sm:$0xff] %vm528, %v511
      %545 = vst.msk [vmem:[%s227 + $0x80] sm:$0xff] %vm528, %v512
      %546 = vst.msk [vmem:[%s227 + $0x88] sm:$0xff] %vm528, %v513
      %547 = vst.msk [vmem:[%s227 + $0x90] sm:$0xff] %vm528, %v514
      %548 = vst.msk [vmem:[%s227 + $0x98] sm:$0xff] %vm528, %v515
      %549 = vst.msk [vmem:[%s227 + $0xa0] sm:$0xff] %vm528, %v516
      %550 = vst.msk [vmem:[%s227 + $0xa8] sm:$0xff] %vm528, %v517
      %551 = vst.msk [vmem:[%s227 + $0xb0] sm:$0xff] %vm528, %v518
      %552 = vst.msk [vmem:[%s227 + $0xb8] sm:$0xff] %vm528, %v519
      %553 = vst.msk [vmem:[%s227 + $0xc0] sm:$0xff] %vm528, %v520
      %554 = vst.msk [vmem:[%s227 + $0xc8] sm:$0xff] %vm528, %v521
      %555 = vst.msk [vmem:[%s227 + $0xd0] sm:$0xff] %vm528, %v522
      %556 = vst.msk [vmem:[%s227 + $0xd8] sm:$0xff] %vm528, %v523
      %557 = vst.msk [vmem:[%s227 + $0xe0] sm:$0xff] %vm528, %v524
      %558 = vst.msk [vmem:[%s227 + $0xe8] sm:$0xff] %vm528, %v525
      %559 = vst.msk [vmem:[%s227 + $0xf0] sm:$0xff] %vm528, %v526
      %560 = vst.msk [vmem:[%s227 + $0xf8] sm:$0xff] %vm528, %v527
      %s561 = smul.u32 32, %s15
      %p562 = scmp.lt.s32.totalorder %s561, 63
      %s563 = scalar_select %p562, %s561, 63
      %s564 = smul.addr %s563, 8
      %s565 = scalar_lea.vmem %s4, %s564
      // Predicated region
      $region37: #{tpu_custom_call.1} parent=35 // pred_check
        %p566 = pneg %p127
      $region38: #{tpu_custom_call.1} parent=35 // pred_check_branch
        %568 = sbr.rel (%p566) target = $region40
      $region39: #{tpu_custom_call.1} parent=35 // pred_region
        %s569 = smul.u32 32, %s15
      $region40: #{tpu_custom_call.1} parent=35 // pred_fallthru
        _
    $region36: #{tpu_custom_call.1} parent=5 // pred_fallthru
      _
    %p570 = scmp.le.s32.totalorder 2, %s10
    // Predicated region
    $region41: #{tpu_custom_call.1} parent=5 // pred_check
      %p571 = pneg %p570
    $region42: #{tpu_custom_call.1} parent=5 // pred_check_branch
      %573 = sbr.rel (%p571) target = $region44
    $region43: #{tpu_custom_call.1} parent=5 // pred_region
      %s574 = ssub.s32 %s10, 2
      // Predicated region
      $region45: #{tpu_custom_call.1} parent=43 // pred_check
        %p575 = pneg %p133
      $region46: #{tpu_custom_call.1} parent=43 // pred_check_branch
        %577 = sbr.rel (%p575) target = $region48
      $region47: #{tpu_custom_call.1} parent=43 // pred_region
        %s578 = smul.u32 32, %s16
        %p579 = scmp.lt.s32.totalorder %s578, 63
        %s580 = scalar_select %p579, %s578, 63
        %s581 = smul.addr %s580, 8
        %s582 = scalar_lea.vmem %s4, %s581
      $region48: #{tpu_custom_call.1} parent=43 // pred_fallthru
        _
    $region44: #{tpu_custom_call.1} parent=5 // pred_fallthru
      _
  $region6: #{tpu_custom_call.1} parent=0 // loop_footer
    %s14 = sadd.s32 1, %s10
  $region7: #{tpu_custom_call.1} parent=0 // loop_footer_branch
    %9 = sbr.rel target = $region3
  $region8: #{tpu_custom_call.1} parent=0 // loop_exit
    _

</llo_original>
